<compile_context>
chip_gen: v5e
topology: v5e:2x2
jax: 0.10.0
libtpu: 0.0.40
codegen_flags: <defaults>
</compile_context>

<pallas_src>
import functools
import math

import jax
import jax.numpy as jnp
from jax import lax
from jax.experimental import pallas as pl
from jax.experimental.pallas import tpu as pltpu


# ---------------------------------------------------------------------------
# Fused Pallas kernel: [Conv1d(s=1,'same') + bias + ReLU + AvgPool(2)] x 2
# One batch element per grid step. In-kernel layout: channels on sublanes,
# length on lanes, i.e. activations are (C, L_layer). The layer-1 activation
# never round-trips HBM.
# ---------------------------------------------------------------------------
def _fused_cnn_kernel(x_ref, w1_ref, b1_ref, w2_ref, b2_ref, o_ref, *, K1, K2):
    # x_ref:  (C_in, L)        one batch element (batch dim squeezed by BlockSpec)
    # w1_ref: (K1, C1, C_in)   per-tap weight slabs, dtype == x dtype
    # b1_ref: (C1, 1)  f32
    # w2_ref: (K2, C2, C1) f32 (first pool's 1/2 pre-folded in by the wrapper)
    # b2_ref: (C2, 1)  f32
    # o_ref:  (C2, L // 4) f32

    def conv1d_same(x, w_ref, b, K):
        # Stride-1 'same' conv as K tap-dots accumulated in f32.
        # Zero-padding == zeroing the boundary lane of the shifted tap; since a
        # tile is one full batch segment, each mask is a single iota compare.
        c_out, n = b.shape[0], x.shape[1]
        pad = (K - 1) // 2
        pos = lax.broadcasted_iota(jnp.int32, (1, n), 1)
        acc = jnp.broadcast_to(b, (c_out, n))                 # bias as accumulator init
        for k in range(K):                                    # K static & tiny -> unrolled
            off = k - pad                                     # tap reads x[:, j + off]
            if off == 0:
                t = x
            else:
                # lane rotation rides the XLU slot; zero lanes whose read would
                # cross the segment edge (== Conv1d zero padding)
                t = pltpu.roll(x, shift=(-off) % n, axis=1)   # t[:, j] = x[:, j + off]
                valid = (pos >= -off) if off < 0 else (pos < n - off)
                t = jnp.where(valid, t, 0.0)
            acc = acc + jnp.dot(w_ref[k], t, preferred_element_type=jnp.float32)
        return acc                                            # (c_out, n) f32

    def relu_sumpool2(y):
        # ReLU then pairwise lane sum; the AvgPool 1/2 factors are handled by
        # the caller (layer-1's folded into w2, layer-2's applied at the store).
        y = jnp.maximum(y, 0.0)
        c, n = y.shape
        return jnp.sum(y.reshape(c, n // 2, 2), axis=-1)      # (c, n // 2)

    x = x_ref[...]                                            # (C_in, L)

    # Layer 1
    y1 = conv1d_same(x, w1_ref, b1_ref[...], K1)              # (C1, L) f32
    y1 = relu_sumpool2(y1)                                    # (C1, L//2), 1/2 folded into w2

    # Layer 2 (segment length halved by the first pooling)
    y2 = conv1d_same(y1, w2_ref, b2_ref[...], K2)             # (C2, L//2) f32
    y2 = relu_sumpool2(y2)                                    # (C2, L//4)

    o_ref[...] = (y2 * 0.5).astype(o_ref.dtype)               # the single remaining pool 1/2


# ---------------------------------------------------------------------------
# Sequence-length bookkeeping (plain JAX glue, mirrors the torch helpers)
# ---------------------------------------------------------------------------
def output_len_conv(x_len, kernel_size, padding, stride, dilation=1):
    return jnp.floor(
        (x_len + 2 * padding - dilation * (kernel_size - 1) - 1) / float(stride) + 1)


def output_len_avgpool(x_len, kernel_size, padding, stride):
    return jnp.floor((x_len + 2 * padding - kernel_size) / float(stride) + 1)


# ---------------------------------------------------------------------------
# SimpleCNN forward (layers=2, pooling='average', no BN / dropout)
# ---------------------------------------------------------------------------
def simple_cnn_forward(x_ncl, x_len, weights, *, layer_cfg, conv_dtype=jnp.float32):
    """x_ncl: (B, C_in, L) like PyTorch NCL; weights: [(w (O,I,K), b (O,)), ...];
    layer_cfg: STATIC tuple of (kernel_size, stride, padding) per layer.
    conv_dtype: dtype of x / w1 fed to the kernel DMA & MXU (f32 or bf16);
    accumulation and everything after the dots stays f32.
    Returns (y_ncl, x_len_out)."""
    assert len(weights) == 2 and len(layer_cfg) == 2, "fused kernel covers 2 layers"
    B, C_in, L = x_ncl.shape
    (K1, s1, p1), (K2, s2, p2) = layer_cfg
    # Static (Python-int) checks — the configured module uses stride=1, 'same' conv.
    assert s1 == 1 and s2 == 1, "kernel implements stride=1 (the configured stride)"
    assert 2 * p1 == K1 - 1 and 2 * p2 == K2 - 1, "kernel implements 'same' conv length"
    assert L % 4 == 0, "two AvgPool(2) stages require L % 4 == 0"

    (w1, b1), (w2, b2) = weights
    C1, C2 = w1.shape[0], w2.shape[0]

    # Per-tap weight slabs (K, C_out, C_in): each tap is one small MXU dot, so
    # no sublane concat of the activation is needed (fixes layer-1's re-pack).
    w1_k = jnp.transpose(w1, (2, 0, 1)).astype(conv_dtype)                  # (K1, C1, C_in)
    # Fold the first AvgPool's 1/2 into the (linear) second conv's weights (exact).
    w2_k = (0.5 * jnp.transpose(w2, (2, 0, 1))).astype(jnp.float32)         # (K2, C2, C1)
    b1_c = b1.reshape(C1, 1).astype(jnp.float32)
    b2_c = b2.reshape(C2, 1).astype(jnp.float32)

    # bf16 here halves the kernel's HBM read bytes (the kernel is HBM-bound at
    # realistic read lengths); f32 matches torch .float() semantics exactly.
    x_k = x_ncl.astype(conv_dtype)

    L_out = L // 4
    kernel = functools.partial(_fused_cnn_kernel, K1=K1, K2=K2)
    y = pl.pallas_call(
        kernel,
        out_shape=jax.ShapeDtypeStruct((B, C2, L_out), jnp.float32),
        grid=(B,),                                            # one batch element / grid step
        in_specs=[
            # NCL indexed natively; batch dim squeezed -> kernel sees (C, L).
            pl.BlockSpec((None, C_in, L), lambda b: (b, 0, 0)),
            pl.BlockSpec((K1, C1, C_in), lambda b: (0, 0, 0)),
            pl.BlockSpec((C1, 1), lambda b: (0, 0)),
            pl.BlockSpec((K2, C2, C1), lambda b: (0, 0, 0)),
            pl.BlockSpec((C2, 1), lambda b: (0, 0)),
        ],
        out_specs=pl.BlockSpec((None, C2, L_out), lambda b: (b, 0, 0)),
        # batch axis is independent -> shard across v7x's 2 TensorCores.
        compiler_params=pltpu.CompilerParams(dimension_semantics=("parallel",)),
    )(x_k, w1_k, b1_c, w2_k, b2_c)

    # x_len bookkeeping (matches outputLen_Conv / outputLen_AvgPool).
    x_len_out = x_len.astype(jnp.float32)
    for (ks, st, pad) in layer_cfg:
        x_len_out = output_len_conv(x_len_out, ks, pad, st, 1)
        x_len_out = output_len_avgpool(x_len_out, 2, 0, 2)
    return y, x_len_out


# ---------------------------------------------------------------------------
# Pure-JAX reference (for in-script correctness check)
# ---------------------------------------------------------------------------
def _ref_layer(x_ncl, w_oik, bias, stride, padding):
    y = lax.conv_general_dilated(
        x_ncl, w_oik, window_strides=(stride,), padding=[(padding, padding)],
        dimension_numbers=("NCH", "OIH", "NCH"))
    y = y + bias[None, :, None]
    y = jnp.maximum(y, 0.0)
    Lp = y.shape[2] // 2
    y = y[:, :, : Lp * 2].reshape(y.shape[0], y.shape[1], Lp, 2).mean(-1)
    return y


def _ref_forward(x_ncl, x_len, weights, layer_cfg):
    x = x_ncl.astype(jnp.float32)
    x_len_out = x_len.astype(jnp.float32)
    for (w_oik, bias), (ks, st, pad) in zip(weights, layer_cfg):
        x = _ref_layer(x, w_oik, bias, st, pad)
        x_len_out = output_len_conv(x_len_out, ks, pad, st, 1)
        x_len_out = output_len_avgpool(x_len_out, 2, 0, 2)
    return x, x_len_out


# ---------------------------------------------------------------------------
if __name__ == "__main__":
    key = jax.random.PRNGKey(0)

    # Module hyper-parameters (small shapes consistent with the module config).
    B, C_IN, L = 2, 4, 16
    OUT_CH = [8, 16]
    LAYER_CFG = ((3, 1, 1), (3, 1, 1))   # (kernel_size, stride, padding) per layer

    # Deterministic parameter init (PyTorch-Conv1d-style uniform bounds),
    # stored in the torch weight layout (C_out, C_in, K).
    weights = []
    c_prev = C_IN
    for (ks, st, pad), c_out in zip(LAYER_CFG, OUT_CH):
        key, kw, kb = jax.random.split(key, 3)
        bound = 1.0 / math.sqrt(float(c_prev * ks))
        w = jax.random.uniform(kw, (c_out, c_prev, ks), jnp.float32, -bound, bound)
        b = jax.random.uniform(kb, (c_out,), jnp.float32, -bound, bound)
        weights.append((w, b))
        c_prev = c_out

    key, kx = jax.random.split(key)
    x = jax.random.normal(kx, (B, C_IN, L), jnp.float32)   # NCL like PyTorch
    x_len = jnp.array([L, L - 3], jnp.float32)

    # --- f32 path: matches the torch module's .float() semantics exactly -----
    fwd = jax.jit(functools.partial(simple_cnn_forward, layer_cfg=LAYER_CFG))
    y, y_len = fwd(x, x_len, weights)
    jax.block_until_ready(y)

    y_ref, y_len_ref = _ref_forward(x, x_len, weights, LAYER_CFG)
    assert y.shape == (B, OUT_CH[-1], L // 4), y.shape
    assert jnp.allclose(y, y_ref, atol=1e-5, rtol=1e-5), \
        float(jnp.max(jnp.abs(y - y_ref)))
    assert jnp.allclose(y_len, y_len_ref)

    # --- bf16-DMA path (perf option): compare against the reference computed on
    # the same bf16-rounded operands, so only f32 accumulation-order noise remains.
    fwd16 = jax.jit(functools.partial(simple_cnn_forward, layer_cfg=LAYER_CFG,
                                      conv_dtype=jnp.bfloat16))
    y16, _ = fwd16(x, x_len, weights)
    jax.block_until_ready(y16)
    x_r = x.astype(jnp.bfloat16).astype(jnp.float32)
    w1_r = weights[0][0].astype(jnp.bfloat16).astype(jnp.float32)
    y16_ref, _ = _ref_forward(x_r, x_len, [(w1_r, weights[0][1]), weights[1]], LAYER_CFG)
    assert jnp.allclose(y16, y16_ref, atol=1e-4, rtol=1e-4), \
        float(jnp.max(jnp.abs(y16 - y16_ref)))

    print("KERNEL_OK")
</pallas_src>

<mosaic_0001>
module attributes {stable_mosaic.version = 11 : i64} {
  func.func @_fused_cnn_kernel(%arg0: i32, %arg1: memref<1x4x16xf32, #tpu.memory_space<vmem>>, %arg2: memref<3x8x4xf32, #tpu.memory_space<vmem>>, %arg3: memref<8x1xf32, #tpu.memory_space<vmem>>, %arg4: memref<3x16x8xf32, #tpu.memory_space<vmem>>, %arg5: memref<16x1xf32, #tpu.memory_space<vmem>>, %arg6: memref<1x16x4xf32, #tpu.memory_space<vmem>>) attributes {dimension_semantics = [#tpu.dimension_semantics<parallel>], iteration_bounds = array<i64: 2>, scalar_prefetch = 0 : i64, scratch_operands = 0 : i64, tpu.core_type = #tpu.core_type<tc>, window_params = [{transform_indices = @transform_0, window_bounds = array<i64: 1, 4, 16>}, {pipeline_mode = #tpu.pipeline_mode<synchronous>, transform_indices = @transform_1, window_bounds = array<i64: 3, 8, 4>}, {pipeline_mode = #tpu.pipeline_mode<synchronous>, transform_indices = @transform_2, window_bounds = array<i64: 8, 1>}, {pipeline_mode = #tpu.pipeline_mode<synchronous>, transform_indices = @transform_3, window_bounds = array<i64: 3, 16, 8>}, {pipeline_mode = #tpu.pipeline_mode<synchronous>, transform_indices = @transform_4, window_bounds = array<i64: 16, 1>}, {transform_indices = @transform_5, window_bounds = array<i64: 1, 16, 4>}]} {
    %c0 = arith.constant 0 : index
    %c0_0 = arith.constant 0 : index
    %c0_1 = arith.constant 0 : index
    %0 = vector.load %arg1[%c0, %c0_0, %c0_1] : memref<1x4x16xf32, #tpu.memory_space<vmem>>, vector<1x4x16xf32>
    %1 = vector.shape_cast %0 : vector<1x4x16xf32> to vector<4x16xf32>
    %c0_2 = arith.constant 0 : index
    %c0_3 = arith.constant 0 : index
    %2 = vector.load %arg3[%c0_2, %c0_3] : memref<8x1xf32, #tpu.memory_space<vmem>>, vector<8x1xf32>
    %3 = tpu.iota {dimensions = array<i32: 1>} : vector<1x16xi32>
    %4 = vector.shape_cast %2 : vector<8x1xf32> to vector<8x1xf32>
    %5 = vector.broadcast %4 : vector<8x1xf32> to vector<8x16xf32>
    %c1_i32 = arith.constant 1 : i32
    %6 = tpu.dynamic_rotate %1 by %c1_i32 dim 1 : vector<4x16xf32>, i32 -> vector<4x16xf32>
    %c1_i32_4 = arith.constant 1 : i32
    %7 = vector.broadcast %c1_i32_4 : i32 to vector<1x16xi32>
    %8 = arith.cmpi sge, %3, %7 : vector<1x16xi32>
    %cst = arith.constant 0.000000e+00 : f32
    %9 = vector.shape_cast %8 : vector<1x16xi1> to vector<1x16xi1>
    %10 = vector.broadcast %9 : vector<1x16xi1> to vector<4x16xi1>
    %11 = vector.broadcast %cst : f32 to vector<4x16xf32>
    %12 = arith.select %10, %6, %11 : vector<4x16xi1>, vector<4x16xf32>
    %c0_5 = arith.constant 0 : index
    %c0_6 = arith.constant 0 : index
    %c0_7 = arith.constant 0 : index
    %13 = vector.load %arg2[%c0_5, %c0_6, %c0_7] : memref<3x8x4xf32, #tpu.memory_space<vmem>>, vector<1x8x4xf32>
    %14 = vector.shape_cast %13 : vector<1x8x4xf32> to vector<8x4xf32>
    %cst_8 = arith.constant dense<0.000000e+00> : vector<8x16xf32>
    %15 = tpu.matmul %14, %12, %cst_8 {dimension_numbers = #tpu.dot_dimension_numbers<[1], [0], [0], [1], [0, 0, 1, 1], [], []>} : vector<8x4xf32>, vector<4x16xf32>, vector<8x16xf32> -> vector<8x16xf32>
    %16 = arith.addf %5, %15 : vector<8x16xf32>
    %c1 = arith.constant 1 : index
    %c0_9 = arith.constant 0 : index
    %c0_10 = arith.constant 0 : index
    %17 = vector.load %arg2[%c1, %c0_9, %c0_10] : memref<3x8x4xf32, #tpu.memory_space<vmem>>, vector<1x8x4xf32>
    %18 = vector.shape_cast %17 : vector<1x8x4xf32> to vector<8x4xf32>
    %cst_11 = arith.constant dense<0.000000e+00> : vector<8x16xf32>
    %19 = tpu.matmul %18, %1, %cst_11 {dimension_numbers = #tpu.dot_dimension_numbers<[1], [0], [0], [1], [0, 0, 1, 1], [], []>} : vector<8x4xf32>, vector<4x16xf32>, vector<8x16xf32> -> vector<8x16xf32>
    %20 = arith.addf %16, %19 : vector<8x16xf32>
    %c15_i32 = arith.constant 15 : i32
    %21 = tpu.dynamic_rotate %1 by %c15_i32 dim 1 : vector<4x16xf32>, i32 -> vector<4x16xf32>
    %c15_i32_12 = arith.constant 15 : i32
    %22 = vector.broadcast %c15_i32_12 : i32 to vector<1x16xi32>
    %23 = arith.cmpi slt, %3, %22 : vector<1x16xi32>
    %cst_13 = arith.constant 0.000000e+00 : f32
    %24 = vector.shape_cast %23 : vector<1x16xi1> to vector<1x16xi1>
    %25 = vector.broadcast %24 : vector<1x16xi1> to vector<4x16xi1>
    %26 = vector.broadcast %cst_13 : f32 to vector<4x16xf32>
    %27 = arith.select %25, %21, %26 : vector<4x16xi1>, vector<4x16xf32>
    %c2 = arith.constant 2 : index
    %c0_14 = arith.constant 0 : index
    %c0_15 = arith.constant 0 : index
    %28 = vector.load %arg2[%c2, %c0_14, %c0_15] : memref<3x8x4xf32, #tpu.memory_space<vmem>>, vector<1x8x4xf32>
    %29 = vector.shape_cast %28 : vector<1x8x4xf32> to vector<8x4xf32>
    %cst_16 = arith.constant dense<0.000000e+00> : vector<8x16xf32>
    %30 = tpu.matmul %29, %27, %cst_16 {dimension_numbers = #tpu.dot_dimension_numbers<[1], [0], [0], [1], [0, 0, 1, 1], [], []>} : vector<8x4xf32>, vector<4x16xf32>, vector<8x16xf32> -> vector<8x16xf32>
    %31 = arith.addf %20, %30 : vector<8x16xf32>
    %cst_17 = arith.constant 0.000000e+00 : f32
    %32 = vector.broadcast %cst_17 : f32 to vector<8x16xf32>
    %33 = arith.maximumf %31, %32 : vector<8x16xf32>
    %34 = vector.shape_cast %33 : vector<8x16xf32> to vector<8x8x2xf32>
    %cst_18 = arith.constant dense<0.000000e+00> : vector<8x8xf32>
    %35 = vector.multi_reduction <add>, %34, %cst_18 [2] : vector<8x8x2xf32> to vector<8x8xf32>
    %c0_19 = arith.constant 0 : index
    %c0_20 = arith.constant 0 : index
    %36 = vector.load %arg5[%c0_19, %c0_20] : memref<16x1xf32, #tpu.memory_space<vmem>>, vector<16x1xf32>
    %37 = tpu.iota {dimensions = array<i32: 1>} : vector<1x8xi32>
    %38 = vector.shape_cast %36 : vector<16x1xf32> to vector<16x1xf32>
    %39 = vector.broadcast %38 : vector<16x1xf32> to vector<16x8xf32>
    %c1_i32_21 = arith.constant 1 : i32
    %40 = tpu.dynamic_rotate %35 by %c1_i32_21 dim 1 : vector<8x8xf32>, i32 -> vector<8x8xf32>
    %c1_i32_22 = arith.constant 1 : i32
    %41 = vector.broadcast %c1_i32_22 : i32 to vector<1x8xi32>
    %42 = arith.cmpi sge, %37, %41 : vector<1x8xi32>
    %cst_23 = arith.constant 0.000000e+00 : f32
    %43 = vector.shape_cast %42 : vector<1x8xi1> to vector<1x8xi1>
    %44 = vector.broadcast %43 : vector<1x8xi1> to vector<8x8xi1>
    %45 = vector.broadcast %cst_23 : f32 to vector<8x8xf32>
    %46 = arith.select %44, %40, %45 : vector<8x8xi1>, vector<8x8xf32>
    %c0_24 = arith.constant 0 : index
    %c0_25 = arith.constant 0 : index
    %c0_26 = arith.constant 0 : index
    %47 = vector.load %arg4[%c0_24, %c0_25, %c0_26] : memref<3x16x8xf32, #tpu.memory_space<vmem>>, vector<1x16x8xf32>
    %48 = vector.shape_cast %47 : vector<1x16x8xf32> to vector<16x8xf32>
    %cst_27 = arith.constant dense<0.000000e+00> : vector<16x8xf32>
    %49 = tpu.matmul %48, %46, %cst_27 {dimension_numbers = #tpu.dot_dimension_numbers<[1], [0], [0], [1], [0, 0, 1, 1], [], []>} : vector<16x8xf32>, vector<8x8xf32>, vector<16x8xf32> -> vector<16x8xf32>
    %50 = arith.addf %39, %49 : vector<16x8xf32>
    %c1_28 = arith.constant 1 : index
    %c0_29 = arith.constant 0 : index
    %c0_30 = arith.constant 0 : index
    %51 = vector.load %arg4[%c1_28, %c0_29, %c0_30] : memref<3x16x8xf32, #tpu.memory_space<vmem>>, vector<1x16x8xf32>
    %52 = vector.shape_cast %51 : vector<1x16x8xf32> to vector<16x8xf32>
    %cst_31 = arith.constant dense<0.000000e+00> : vector<16x8xf32>
    %53 = tpu.matmul %52, %35, %cst_31 {dimension_numbers = #tpu.dot_dimension_numbers<[1], [0], [0], [1], [0, 0, 1, 1], [], []>} : vector<16x8xf32>, vector<8x8xf32>, vector<16x8xf32> -> vector<16x8xf32>
    %54 = arith.addf %50, %53 : vector<16x8xf32>
    %c7_i32 = arith.constant 7 : i32
    %55 = tpu.dynamic_rotate %35 by %c7_i32 dim 1 : vector<8x8xf32>, i32 -> vector<8x8xf32>
    %c7_i32_32 = arith.constant 7 : i32
    %56 = vector.broadcast %c7_i32_32 : i32 to vector<1x8xi32>
    %57 = arith.cmpi slt, %37, %56 : vector<1x8xi32>
    %cst_33 = arith.constant 0.000000e+00 : f32
    %58 = vector.shape_cast %57 : vector<1x8xi1> to vector<1x8xi1>
    %59 = vector.broadcast %58 : vector<1x8xi1> to vector<8x8xi1>
    %60 = vector.broadcast %cst_33 : f32 to vector<8x8xf32>
    %61 = arith.select %59, %55, %60 : vector<8x8xi1>, vector<8x8xf32>
    %c2_34 = arith.constant 2 : index
    %c0_35 = arith.constant 0 : index
    %c0_36 = arith.constant 0 : index
    %62 = vector.load %arg4[%c2_34, %c0_35, %c0_36] : memref<3x16x8xf32, #tpu.memory_space<vmem>>, vector<1x16x8xf32>
    %63 = vector.shape_cast %62 : vector<1x16x8xf32> to vector<16x8xf32>
    %cst_37 = arith.constant dense<0.000000e+00> : vector<16x8xf32>
    %64 = tpu.matmul %63, %61, %cst_37 {dimension_numbers = #tpu.dot_dimension_numbers<[1], [0], [0], [1], [0, 0, 1, 1], [], []>} : vector<16x8xf32>, vector<8x8xf32>, vector<16x8xf32> -> vector<16x8xf32>
    %65 = arith.addf %54, %64 : vector<16x8xf32>
    %cst_38 = arith.constant 0.000000e+00 : f32
    %66 = vector.broadcast %cst_38 : f32 to vector<16x8xf32>
    %67 = arith.maximumf %65, %66 : vector<16x8xf32>
    %68 = vector.shape_cast %67 : vector<16x8xf32> to vector<16x4x2xf32>
    %cst_39 = arith.constant dense<0.000000e+00> : vector<16x4xf32>
    %69 = vector.multi_reduction <add>, %68, %cst_39 [2] : vector<16x4x2xf32> to vector<16x4xf32>
    %cst_40 = arith.constant 5.000000e-01 : f32
    %70 = vector.broadcast %cst_40 : f32 to vector<16x4xf32>
    %71 = arith.mulf %69, %70 : vector<16x4xf32>
    %c0_41 = arith.constant 0 : index
    %c0_42 = arith.constant 0 : index
    %c0_43 = arith.constant 0 : index
    %72 = vector.load %arg6[%c0_41, %c0_42, %c0_43] : memref<1x16x4xf32, #tpu.memory_space<vmem>>, vector<1x16x4xf32>
    %73 = vector.shape_cast %72 : vector<1x16x4xf32> to vector<16x4xf32>
    %74 = vector.shape_cast %71 : vector<16x4xf32> to vector<1x16x4xf32>
    tpu.vector_store %arg6[%c0_41, %c0_42, %c0_43], %74 {strides = array<i32>} : memref<1x16x4xf32, #tpu.memory_space<vmem>>, vector<1x16x4xf32>,
    return
  }
  func.func @transform_0(%arg0: i32) -> (i32, i32, i32) {
    %c0_i32 = arith.constant 0 : i32
    %c0_i32_0 = arith.constant 0 : i32
    %c0_i32_1 = arith.constant 0 : i32
    return %arg0, %c0_i32, %c0_i32_0 : i32, i32, i32
  }
  func.func @transform_1(%arg0: i32) -> (i32, i32, i32) {
    %c0_i32 = arith.constant 0 : i32
    %c0_i32_0 = arith.constant 0 : i32
    %c0_i32_1 = arith.constant 0 : i32
    %c0_i32_2 = arith.constant 0 : i32
    return %c0_i32, %c0_i32_0, %c0_i32_1 : i32, i32, i32
  }
  func.func @transform_2(%arg0: i32) -> (i32, i32) {
    %c0_i32 = arith.constant 0 : i32
    %c0_i32_0 = arith.constant 0 : i32
    %c0_i32_1 = arith.constant 0 : i32
    return %c0_i32, %c0_i32_0 : i32, i32
  }
  func.func @transform_3(%arg0: i32) -> (i32, i32, i32) {
    %c0_i32 = arith.constant 0 : i32
    %c0_i32_0 = arith.constant 0 : i32
    %c0_i32_1 = arith.constant 0 : i32
    %c0_i32_2 = arith.constant 0 : i32
    return %c0_i32, %c0_i32_0, %c0_i32_1 : i32, i32, i32
  }
  func.func @transform_4(%arg0: i32) -> (i32, i32) {
    %c0_i32 = arith.constant 0 : i32
    %c0_i32_0 = arith.constant 0 : i32
    %c0_i32_1 = arith.constant 0 : i32
    return %c0_i32, %c0_i32_0 : i32, i32
  }
  func.func @transform_5(%arg0: i32) -> (i32, i32, i32) {
    %c0_i32 = arith.constant 0 : i32
    %c0_i32_0 = arith.constant 0 : i32
    %c0_i32_1 = arith.constant 0 : i32
    return %arg0, %c0_i32, %c0_i32_0 : i32, i32, i32
  }
}

</mosaic_0001>

<llo_original>
// kernel: simple_cnn_forward.1
$region0: #{simple_cnn_forward.1}
  #allocation0 [shape = 'u32[]', space=smem, size = 0x4, offset = 0x4, fixed_abs, tag = 'smem constant byte address 0x4 - core index']
  #allocation1 [shape = 'u32[72,128]{1,0:T(1,128)}', space=vmem, size = 0x9000, scoped, tag = 'internal scratch']
  %s0 = inlined_call_operand.vmem [shape: f32[2,4,16], index: 0, kind: input, shape index: {}]
  %s1 = inlined_call_operand.vmem [shape: f32[3,8,4], index: 1, kind: input, shape index: {}]
  %s2 = inlined_call_operand.vmem [shape: f32[8,1], index: 2, kind: input, shape index: {}]
  %s3 = inlined_call_operand.vmem [shape: f32[3,16,8], index: 3, kind: input, shape index: {}]
  %s4 = inlined_call_operand.vmem [shape: f32[16,1], index: 4, kind: input, shape index: {}]
  %s5 = inlined_call_operand.vmem [shape: f32[2,16,4], index: 5, kind: output, shape index: {}]
  %s6 = sld [smem:[#allocation0]]
  $region53: #{simple_cnn_forward.1} parent=0
    _
  %s8 = ssub.s32 1, %s6
  %s9 = scalar_select 0, %s8, %s6
  loop: start=0, step=1, limit=4
  $region2: #{simple_cnn_forward.1} parent=0 // loop_pre_header
    _
  $region3: #{simple_cnn_forward.1} parent=0 // loop_header
    %s11 = sphi 0, %s15
    %p12 = scmp.ge.s32.totalorder %s11, 4
    %s21 = sphi 0, %s23
    %s24 = sphi 0, %s21
    %s25 = sphi 0, %s24
    %s41 = sphi 0, %s25
    %s45 = sphi 0, %s45
    %s47 = sphi 0, %s45
    %s48 = sphi 0, %s47
    %s62 = sphi 0, %s48
    %s66 = sphi 0, %s66
    %s68 = sphi 0, %s66
    %s69 = sphi 0, %s68
    %s83 = sphi 0, %s69
    %s87 = sphi 0, %s87
    %s89 = sphi 0, %s87
    %s90 = sphi 0, %s89
    %s104 = sphi 0, %s90
    %s108 = sphi 0, %s108
    %s110 = sphi 0, %s108
    %s111 = sphi 0, %s110
    %s125 = sphi 0, %s111
    %s131 = sphi 0, %s133
    %s134 = sphi 0, %s131
    %s135 = sphi 0, %s134
    %s151 = sphi 0, %s135
  $region4: #{simple_cnn_forward.1} parent=0 // loop_header_branch
    %14 = sbr.rel (%p12) target = $region8
  $region5: #{simple_cnn_forward.1} parent=0 // loop_body
    %s16 = ssub.s32 %s11, 1
    %s17 = ssub.s32 %s11, 2
    %s18 = sadd.s32 %s11, 1
    %s19 = ssub.s32 %s11, %s18
    %p20 = scmp.eq.s32.totalorder %s19, 0
    %s22 = sadd.s32 %s21, 1
    %s23 = scalar_select %p20, %s21, %s22
    %p26 = pneg %p20
    %p27 = scmp.eq.s32.totalorder %s11, 1
    %p28 = por %p26, %p27
    %p29 = scmp.ne.s32.totalorder %s21, %s24
    %p30 = scmp.eq.s32.totalorder %s11, 0
    %p31 = por %p29, %p30
    %p32 = scmp.ne.s32.totalorder %s21, %s24
    %p33 = scmp.eq.s32.totalorder %s16, 1
    %p34 = por %p32, %p33
    %p35 = scmp.ne.s32.totalorder %s24, %s25
    %p36 = scmp.eq.s32.totalorder %s16, 0
    %p37 = por %p35, %p36
    %p38 = scmp.ne.s32.totalorder %s24, %s25
    %p39 = scmp.eq.s32.totalorder %s17, 1
    %p40 = por %p38, %p39
    %p42 = scmp.ne.s32.totalorder %s25, %s41
    %p43 = scmp.eq.s32.totalorder %s17, 0
    %p44 = por %p42, %p43
    %s46 = sadd.s32 %s45, 1
    %p49 = scmp.eq.s32.totalorder %s11, 1
    %p50 = scmp.ne.s32.totalorder %s45, %s47
    %p51 = scmp.eq.s32.totalorder %s11, 0
    %p52 = por %p50, %p51
    %p53 = scmp.ne.s32.totalorder %s45, %s47
    %p54 = scmp.eq.s32.totalorder %s16, 1
    %p55 = por %p53, %p54
    %p56 = scmp.ne.s32.totalorder %s47, %s48
    %p57 = scmp.eq.s32.totalorder %s16, 0
    %p58 = por %p56, %p57
    %p59 = scmp.ne.s32.totalorder %s47, %s48
    %p60 = scmp.eq.s32.totalorder %s17, 1
    %p61 = por %p59, %p60
    %p63 = scmp.ne.s32.totalorder %s48, %s62
    %p64 = scmp.eq.s32.totalorder %s17, 0
    %p65 = por %p63, %p64
    %s67 = sadd.s32 %s66, 1
    %p70 = scmp.eq.s32.totalorder %s11, 1
    %p71 = scmp.ne.s32.totalorder %s66, %s68
    %p72 = scmp.eq.s32.totalorder %s11, 0
    %p73 = por %p71, %p72
    %p74 = scmp.ne.s32.totalorder %s66, %s68
    %p75 = scmp.eq.s32.totalorder %s16, 1
    %p76 = por %p74, %p75
    %p77 = scmp.ne.s32.totalorder %s68, %s69
    %p78 = scmp.eq.s32.totalorder %s16, 0
    %p79 = por %p77, %p78
    %p80 = scmp.ne.s32.totalorder %s68, %s69
    %p81 = scmp.eq.s32.totalorder %s17, 1
    %p82 = por %p80, %p81
    %p84 = scmp.ne.s32.totalorder %s69, %s83
    %p85 = scmp.eq.s32.totalorder %s17, 0
    %p86 = por %p84, %p85
    %s88 = sadd.s32 %s87, 1
    %p91 = scmp.eq.s32.totalorder %s11, 1
    %p92 = scmp.ne.s32.totalorder %s87, %s89
    %p93 = scmp.eq.s32.totalorder %s11, 0
    %p94 = por %p92, %p93
    %p95 = scmp.ne.s32.totalorder %s87, %s89
    %p96 = scmp.eq.s32.totalorder %s16, 1
    %p97 = por %p95, %p96
    %p98 = scmp.ne.s32.totalorder %s89, %s90
    %p99 = scmp.eq.s32.totalorder %s16, 0
    %p100 = por %p98, %p99
    %p101 = scmp.ne.s32.totalorder %s89, %s90
    %p102 = scmp.eq.s32.totalorder %s17, 1
    %p103 = por %p101, %p102
    %p105 = scmp.ne.s32.totalorder %s90, %s104
    %p106 = scmp.eq.s32.totalorder %s17, 0
    %p107 = por %p105, %p106
    %s109 = sadd.s32 %s108, 1
    %p112 = scmp.eq.s32.totalorder %s11, 1
    %p113 = scmp.ne.s32.totalorder %s108, %s110
    %p114 = scmp.eq.s32.totalorder %s11, 0
    %p115 = por %p113, %p114
    %p116 = scmp.ne.s32.totalorder %s108, %s110
    %p117 = scmp.eq.s32.totalorder %s16, 1
    %p118 = por %p116, %p117
    %p119 = scmp.ne.s32.totalorder %s110, %s111
    %p120 = scmp.eq.s32.totalorder %s16, 0
    %p121 = por %p119, %p120
    %p122 = scmp.ne.s32.totalorder %s110, %s111
    %p123 = scmp.eq.s32.totalorder %s17, 1
    %p124 = por %p122, %p123
    %p126 = scmp.ne.s32.totalorder %s111, %s125
    %p127 = scmp.eq.s32.totalorder %s17, 0
    %p128 = por %p126, %p127
    %s129 = ssub.s32 %s11, %s18
    %p130 = scmp.eq.s32.totalorder %s129, 0
    %s132 = sadd.s32 %s131, 1
    %s133 = scalar_select %p130, %s131, %s132
    %p136 = pneg %p130
    %p137 = scmp.eq.s32.totalorder %s11, 1
    %p138 = por %p136, %p137
    %p139 = scmp.ne.s32.totalorder %s131, %s134
    %p140 = scmp.eq.s32.totalorder %s11, 0
    %p141 = por %p139, %p140
    %p142 = scmp.ne.s32.totalorder %s131, %s134
    %p143 = scmp.eq.s32.totalorder %s16, 1
    %p144 = por %p142, %p143
    %p145 = scmp.ne.s32.totalorder %s134, %s135
    %p146 = scmp.eq.s32.totalorder %s16, 0
    %p147 = por %p145, %p146
    %p148 = scmp.ne.s32.totalorder %s134, %s135
    %p149 = scmp.eq.s32.totalorder %s17, 1
    %p150 = por %p148, %p149
    %p152 = scmp.ne.s32.totalorder %s135, %s151
    %p153 = scmp.eq.s32.totalorder %s17, 0
    %p154 = por %p152, %p153
    %p155 = scmp.le.s32.totalorder 1, %s11
    %p156 = scmp.lt.s32.totalorder %s11, 3
    %p157 = pnand %p155, %p156
    %p158 = pneg %p157
    // Predicated region
    $region9: #{simple_cnn_forward.1} parent=5 // pred_check
      _
    $region10: #{simple_cnn_forward.1} parent=5 // pred_check_branch
      %160 = sbr.rel (%p157) target = $region12
    $region11: #{simple_cnn_forward.1} parent=5 // pred_region
      %s161 = ssub.s32 %s11, 1
      // Predicated region
      $region13: #{simple_cnn_forward.1} parent=11 // pred_check
        %p162 = pneg %p58
      $region14: #{simple_cnn_forward.1} parent=11 // pred_check_branch
        %164 = sbr.rel (%p162) target = $region16
      $region15: #{simple_cnn_forward.1} parent=11 // pred_region
        _
      $region16: #{simple_cnn_forward.1} parent=11 // pred_fallthru
        _
      // Predicated region
      $region17: #{simple_cnn_forward.1} parent=11 // pred_check
        %p165 = pneg %p79
      $region18: #{simple_cnn_forward.1} parent=11 // pred_check_branch
        %167 = sbr.rel (%p165) target = $region20
      $region19: #{simple_cnn_forward.1} parent=11 // pred_region
        _
      $region20: #{simple_cnn_forward.1} parent=11 // pred_fallthru
        _
      // Predicated region
      $region21: #{simple_cnn_forward.1} parent=11 // pred_check
        %p168 = pneg %p100
      $region22: #{simple_cnn_forward.1} parent=11 // pred_check_branch
        %170 = sbr.rel (%p168) target = $region24
      $region23: #{simple_cnn_forward.1} parent=11 // pred_region
        _
      $region24: #{simple_cnn_forward.1} parent=11 // pred_fallthru
        _
      // Predicated region
      $region25: #{simple_cnn_forward.1} parent=11 // pred_check
        %p171 = pneg %p121
      $region26: #{simple_cnn_forward.1} parent=11 // pred_check_branch
        %173 = sbr.rel (%p171) target = $region28
      $region27: #{simple_cnn_forward.1} parent=11 // pred_region
        _
      $region28: #{simple_cnn_forward.1} parent=11 // pred_fallthru
        _
    $region12: #{simple_cnn_forward.1} parent=5 // pred_fallthru
      _
    %p174 = scmp.lt.s32.totalorder %s11, 2
    // Predicated region
    $region29: #{simple_cnn_forward.1} parent=5 // pred_check
      %p175 = pneg %p174
    $region30: #{simple_cnn_forward.1} parent=5 // pred_check_branch
      %177 = sbr.rel (%p175) target = $region32
    $region31: #{simple_cnn_forward.1} parent=5 // pred_region
      // Predicated region
      $region33: #{simple_cnn_forward.1} parent=31 // pred_check
        %p178 = pneg %p31
      $region34: #{simple_cnn_forward.1} parent=31 // pred_check_branch
        %180 = sbr.rel (%p178) target = $region36
      $region35: #{simple_cnn_forward.1} parent=31 // pred_region
        %p181 = scmp.lt.s32.totalorder %s11, 1
        %s182 = scalar_select %p181, %s11, 1
        %s183 = smul.addr %s182, 4
        %s184 = scalar_lea.vmem %s0, %s183
      $region36: #{simple_cnn_forward.1} parent=31 // pred_fallthru
        _
    $region32: #{simple_cnn_forward.1} parent=5 // pred_fallthru
      _
    %p185 = scmp.le.s32.totalorder 1, %s11
    %p186 = scmp.lt.s32.totalorder %s11, 3
    %p187 = pnand %p185, %p186
    %p188 = pneg %p187
    // Predicated region
    $region37: #{simple_cnn_forward.1} parent=5 // pred_check
      _
    $region38: #{simple_cnn_forward.1} parent=5 // pred_check_branch
      %190 = sbr.rel (%p187) target = $region40
    $region39: #{simple_cnn_forward.1} parent=5 // pred_region
      %s191 = ssub.s32 %s11, 1
      %p192 = scmp.lt.s32.totalorder %s16, 1
      %s193 = scalar_select %p192, %s16, 1
      %s194 = smul.addr %s193, 4
      %s195 = scalar_lea.vmem %s0, %s194
      %p196 = pneg %p37
      %p197 = pneg %p34
      %p198 = pneg %p58
      %p199 = pneg %p55
      %p200 = pneg %p79
      %p201 = pneg %p76
      %p202 = pneg %p100
      %p203 = pneg %p97
      %p204 = pneg %p121
      %p205 = pneg %p118
      %p206 = pneg %p147
      %p207 = pneg %p144
      %p208 = scmp.lt.s32.totalorder %s16, 1
      %s209 = scalar_select %p208, %s16, 1
      %s210 = smul.addr %s209, 2
      %s211 = smul.addr %s210, 8
      %s212 = scalar_lea.vmem %s5, %s211
      %p213 = scmp.lt.s32.totalorder %s16, 1
      %s214 = scalar_select %p213, %s16, 1
      %s215 = smul.addr %s214, 4
      %s216 = scalar_lea.vmem %s0, %s215
      %p217 = scmp.lt.s32.totalorder %s16, 1
      %s218 = scalar_select %p217, %s16, 1
      %s219 = smul.addr %s218, 2
      %s220 = smul.addr %s219, 8
      %s221 = scalar_lea.vmem %s5, %s220
      %v222 = vld [vmem:[%s216] sm:$0xf]
      %v223 = vld [vmem:[%s2] sm:$0xff]
      %v224 = vlaneseq
      %v225 = vand.u32 %v224, 127
      %227 = vset.pattern.permute.xlu0 0
      %228 = vperm.xlu0 %227, %v223
      %v229 = vpop.permute.xlu0 %228
      %vm231 = vcmask 1047680
      %232 = vrot.lane.b32.xlu0 %v222, 16
      %v233 = vpop.permute.xlu0 %232
      %v234 = vsel %vm231, %v233, %v222
      %235 = vrot.lane.b32.xlu0 %v234, 16
      %v236 = vpop.permute.xlu0 %235
      %v237 = vsel %vm231, %v236, %v222
      %vm238 = vcmp.ge.s32.totalorder %v225, 1
      %v239 = vsel %vm238, 1, 0
      %vm240 = vcmp.eq.s32.totalorder %v239, 1
      %242 = vrot.lane.b32.xlu0 %v237, 113
      %v243 = vpop.permute.xlu0 %242
      %v245 = vsel %vm240, %v243, 0.0
      %v246 = vld [vmem:[%s1] sm:$0xff]
      %vm247 = vcmask 31744
      %v249 = vsel %vm247, %v246, 0
      %vm251 = vcmask 1043456
      %v253 = vsel %vm251, %v245, 0
      %255 = vmatpush.msra.mxu0 0.0
      %256 = vmatpush.msra.mxu0 0.0
      %257 = vmatpush.msra.mxu0 0.0
      %258 = vmatpush.msra.mxu0 0.0
      %259 = vmatpush.msra.mxu0 0.0
      %260 = vmatpush.msra.mxu0 0.0
      %261 = vmatpush.msra.mxu0 0.0
      %262 = vmatpush.msra.mxu0 0.0
      %263 = vmatpush.msra.mxu0 0.0
      %264 = vmatpush.msra.mxu0 0.0
      %265 = vmatpush.msra.mxu0 0.0
      %266 = vmatpush.msra.mxu0 0.0
      %267 = vmatpush.msra.mxu0 0.0
      %268 = vmatpush.msra.mxu0 0.0
      %269 = vmatpush.msra.mxu0 0.0
      %270 = vmatpush.msra.mxu0 %v253
      %271 = vmatmul.f32.gmra.mxu0 %v249
      %v272 = vpop.f32.mrf.mxu0
      %v273 = vadd.f32 0.0, %v272
      %274 = vdwg.mxu0
      %v275 = vadd.f32 %v229, %v273
      %s276 = scalar_lea.vmem %s1, 8
      %v277 = vld [vmem:[%s276] sm:$0xff]
      %v279 = vsel %vm247, %v277, 0
      %v282 = vsel %vm251, %v222, 0
      %284 = vmatpush.msra.mxu0 0.0
      %285 = vmatpush.msra.mxu0 0.0
      %286 = vmatpush.msra.mxu0 0.0
      %287 = vmatpush.msra.mxu0 0.0
      %288 = vmatpush.msra.mxu0 0.0
      %289 = vmatpush.msra.mxu0 0.0
      %290 = vmatpush.msra.mxu0 0.0
      %291 = vmatpush.msra.mxu0 0.0
      %292 = vmatpush.msra.mxu0 0.0
      %293 = vmatpush.msra.mxu0 0.0
      %294 = vmatpush.msra.mxu0 0.0
      %295 = vmatpush.msra.mxu0 0.0
      %296 = vmatpush.msra.mxu0 0.0
      %297 = vmatpush.msra.mxu0 0.0
      %298 = vmatpush.msra.mxu0 0.0
      %299 = vmatpush.msra.mxu0 %v282
      %300 = vmatmul.f32.gmra.mxu0 %v279
      %v301 = vpop.f32.mrf.mxu0
      %v302 = vadd.f32 0.0, %v301
      %303 = vdwg.mxu0
      %v304 = vadd.f32 %v275, %v302
      %vm305 = vcmp.lt.s32.totalorder %v225, 15
      %v306 = vsel %vm305, 1, 0
      %vm307 = vcmp.eq.s32.totalorder %v306, 1
      %308 = vrot.lane.b32.xlu0 %v237, 127
      %v309 = vpop.permute.xlu0 %308
      %v311 = vsel %vm307, %v309, 0.0
      %s312 = scalar_lea.vmem %s1, 16
      %v313 = vld [vmem:[%s312] sm:$0xff]
      %v315 = vsel %vm247, %v313, 0
      %v318 = vsel %vm251, %v311, 0
      %320 = vmatpush.msra.mxu0 0.0
      %321 = vmatpush.msra.mxu0 0.0
      %322 = vmatpush.msra.mxu0 0.0
      %323 = vmatpush.msra.mxu0 0.0
      %324 = vmatpush.msra.mxu0 0.0
      %325 = vmatpush.msra.mxu0 0.0
      %326 = vmatpush.msra.mxu0 0.0
      %327 = vmatpush.msra.mxu0 0.0
      %328 = vmatpush.msra.mxu0 0.0
      %329 = vmatpush.msra.mxu0 0.0
      %330 = vmatpush.msra.mxu0 0.0
      %331 = vmatpush.msra.mxu0 0.0
      %332 = vmatpush.msra.mxu0 0.0
      %333 = vmatpush.msra.mxu0 0.0
      %334 = vmatpush.msra.mxu0 0.0
      %335 = vmatpush.msra.mxu0 %v318
      %336 = vmatmul.f32.gmra.mxu0 %v315
      %v337 = vpop.f32.mrf.mxu0
      %v338 = vadd.f32 0.0, %v337
      %339 = vdwg.mxu0
      %v340 = vadd.f32 %v304, %v338
      %v341 = vmax.f32 %v340, 0.0
      %343 = vrot.lane.b32.xlu0 %v341, 126
      %v344 = vpop.permute.xlu0 %343
      %346 = vrot.lane.b32.xlu0 %v341, 124
      %v347 = vpop.permute.xlu0 %346
      %349 = vrot.lane.b32.xlu0 %v341, 122
      %v350 = vpop.permute.xlu0 %349
      %352 = vrot.lane.b32.xlu0 %v341, 120
      %v353 = vpop.permute.xlu0 %352
      %355 = vrot.lane.b32.xlu0 %v341, 118
      %v356 = vpop.permute.xlu0 %355
      %358 = vrot.lane.b32.xlu0 %v341, 116
      %v359 = vpop.permute.xlu0 %358
      %361 = vrot.lane.b32.xlu0 %v341, 114
      %v362 = vpop.permute.xlu0 %361
      %v364 = vrot.slane %v347, 4
      %vm365 = vcmask 1047556
      %v366 = vsel %vm365, %v364, %v341
      %v367 = vrot.slane %v341, 4
      %v368 = vsel %vm365, %v347, %v367
      %v370 = vunpack.c.l.s4 1983009808
      %v371 = vunpack.c.0.s8 %v370
      %v372 = vperm.slane %v366, %v371
      %v374 = vunpack.c.l.s4 1983009808
      %v375 = vunpack.c.0.s8 %v374
      %v376 = vperm.slane %v368, %v375
      %v377 = vrot.slane %v350, 4
      %v378 = vsel %vm365, %v377, %v344
      %v379 = vrot.slane %v344, 4
      %v380 = vsel %vm365, %v350, %v379
      %v382 = vunpack.c.l.s4 1983009808
      %v383 = vunpack.c.0.s8 %v382
      %v384 = vperm.slane %v378, %v383
      %v386 = vunpack.c.l.s4 1983009808
      %v387 = vunpack.c.0.s8 %v386
      %v388 = vperm.slane %v380, %v387
      %v389 = vrot.slane %v359, 4
      %v390 = vsel %vm365, %v389, %v353
      %v391 = vrot.slane %v353, 4
      %v392 = vsel %vm365, %v359, %v391
      %v394 = vunpack.c.l.s4 1983009808
      %v395 = vunpack.c.0.s8 %v394
      %v396 = vperm.slane %v390, %v395
      %v398 = vunpack.c.l.s4 1983009808
      %v399 = vunpack.c.0.s8 %v398
      %v400 = vperm.slane %v392, %v399
      %v401 = vrot.slane %v362, 4
      %v402 = vsel %vm365, %v401, %v356
      %v403 = vrot.slane %v356, 4
      %v404 = vsel %vm365, %v362, %v403
      %v406 = vunpack.c.l.s4 1983009808
      %v407 = vunpack.c.0.s8 %v406
      %v408 = vperm.slane %v402, %v407
      %v410 = vunpack.c.l.s4 1983009808
      %v411 = vunpack.c.0.s8 %v410
      %v412 = vperm.slane %v404, %v411
      %v413 = vrot.slane %v384, 4
      %v414 = vsel %vm365, %v413, %v372
      %v415 = vrot.slane %v372, 4
      %v416 = vsel %vm365, %v384, %v415
      %v418 = vunpack.c.l.s4 1934713408
      %v419 = vunpack.c.0.s8 %v418
      %v420 = vperm.slane %v414, %v419
      %v422 = vunpack.c.l.s4 1934713408
      %v423 = vunpack.c.0.s8 %v422
      %v424 = vperm.slane %v416, %v423
      %v425 = vrot.slane %v388, 4
      %v426 = vsel %vm365, %v425, %v376
      %v427 = vrot.slane %v376, 4
      %v428 = vsel %vm365, %v388, %v427
      %v430 = vunpack.c.l.s4 1934713408
      %v431 = vunpack.c.0.s8 %v430
      %v432 = vperm.slane %v426, %v431
      %v434 = vunpack.c.l.s4 1934713408
      %v435 = vunpack.c.0.s8 %v434
      %v436 = vperm.slane %v428, %v435
      %v437 = vrot.slane %v408, 4
      %v438 = vsel %vm365, %v437, %v396
      %v439 = vrot.slane %v396, 4
      %v440 = vsel %vm365, %v408, %v439
      %v442 = vunpack.c.l.s4 1934713408
      %v443 = vunpack.c.0.s8 %v442
      %v444 = vperm.slane %v438, %v443
      %v446 = vunpack.c.l.s4 1934713408
      %v447 = vunpack.c.0.s8 %v446
      %v448 = vperm.slane %v440, %v447
      %v449 = vrot.slane %v412, 4
      %v450 = vsel %vm365, %v449, %v400
      %v451 = vrot.slane %v400, 4
      %v452 = vsel %vm365, %v412, %v451
      %v454 = vunpack.c.l.s4 1934713408
      %v455 = vunpack.c.0.s8 %v454
      %v456 = vperm.slane %v450, %v455
      %v458 = vunpack.c.l.s4 1934713408
      %v459 = vunpack.c.0.s8 %v458
      %v460 = vperm.slane %v452, %v459
      %v461 = vrot.slane %v444, 4
      %v462 = vsel %vm365, %v461, %v420
      %v463 = vrot.slane %v420, 4
      %v464 = vsel %vm365, %v444, %v463
      %v465 = vrot.slane %v448, 4
      %v466 = vsel %vm365, %v465, %v424
      %v467 = vrot.slane %v424, 4
      %v468 = vsel %vm365, %v448, %v467
      %v469 = vrot.slane %v456, 4
      %v470 = vsel %vm365, %v469, %v432
      %v471 = vrot.slane %v432, 4
      %v472 = vsel %vm365, %v456, %v471
      %v473 = vrot.slane %v460, 4
      %v474 = vsel %vm365, %v473, %v436
      %v475 = vrot.slane %v436, 4
      %v476 = vsel %vm365, %v460, %v475
      %vm477 = vcmask 15360
      %v478 = vsel %vm477, %v462, 0.0
      %479 = vadd.xlane.f32.xlu0 %v478
      %v480 = vpop.xlane.xlu0 %479
      %v481 = vsel %vm477, %v464, 0.0
      %482 = vadd.xlane.f32.xlu0 %v481
      %v483 = vpop.xlane.xlu0 %482
      %v484 = vsel %vm477, %v466, 0.0
      %485 = vadd.xlane.f32.xlu0 %v484
      %v486 = vpop.xlane.xlu0 %485
      %v487 = vsel %vm477, %v468, 0.0
      %488 = vadd.xlane.f32.xlu0 %v487
      %v489 = vpop.xlane.xlu0 %488
      %v490 = vsel %vm477, %v470, 0.0
      %491 = vadd.xlane.f32.xlu0 %v490
      %v492 = vpop.xlane.xlu0 %491
      %v493 = vsel %vm477, %v472, 0.0
      %494 = vadd.xlane.f32.xlu0 %v493
      %v495 = vpop.xlane.xlu0 %494
      %v496 = vsel %vm477, %v474, 0.0
      %497 = vadd.xlane.f32.xlu0 %v496
      %v498 = vpop.xlane.xlu0 %497
      %v499 = vsel %vm477, %v476, 0.0
      %500 = vadd.xlane.f32.xlu0 %v499
      %v501 = vpop.xlane.xlu0 %500
      %v502 = vld [vmem:[%s4] sm:$0xff]
      %v503 = vld [vmem:[%s4 + $0x8] sm:$0xff]
      %505 = vset.pattern.permute.xlu0 0
      %506 = vperm.xlu0 %505, %v502
      %v507 = vpop.permute.xlu0 %506
      %510 = vset.pattern.permute.xlu0 0
      %511 = vperm.xlu0 %510, %v503
      %v512 = vpop.permute.xlu0 %511
      %v522 = vperm.slane %v480, %v225
      %v523 = vperm.slane %v483, %v225
      %v524 = vperm.slane %v486, %v225
      %v525 = vperm.slane %v489, %v225
      %v526 = vperm.slane %v492, %v225
      %v527 = vperm.slane %v495, %v225
      %v528 = vperm.slane %v498, %v225
      %v529 = vperm.slane %v501, %v225
      %vm530 = vcmask 1041409
      %v531 = vsel %vm530, %v523, %v522
      %vm532 = vcmask 1042434
      %v533 = vsel %vm532, %v524, %v531
      %vm534 = vcmask 1043459
      %v535 = vsel %vm534, %v525, %v533
      %vm536 = vcmask 1044484
      %v537 = vsel %vm536, %v526, %v535
      %vm538 = vcmask 1045509
      %v539 = vsel %vm538, %v527, %v537
      %vm540 = vcmask 1046534
      %v541 = vsel %vm540, %v528, %v539
      %vm542 = vcmask 1047559
      %v543 = vsel %vm542, %v529, %v541
      %vm545 = vcmask 1047616
      %546 = vrot.lane.b32.xlu0 %v543, 8
      %v547 = vpop.permute.xlu0 %546
      %v548 = vsel %vm545, %v547, %v543
      %549 = vrot.lane.b32.xlu0 %v548, 8
      %v550 = vpop.permute.xlu0 %549
      %v551 = vsel %vm545, %v550, %v543
      %553 = vrot.lane.b32.xlu0 %v551, 121
      %v554 = vpop.permute.xlu0 %553
      %v556 = vsel %vm240, %v554, 0.0
      %v557 = vld [vmem:[%s3] sm:$0xff]
      %v558 = vld [vmem:[%s3 + $0x8] sm:$0xff]
      %vm559 = vcmask 64512
      %v561 = vsel %vm559, %v557, 0
      %v564 = vsel %vm559, %v558, 0
      %566 = vmatpush.msra.mxu0 0.0
      %567 = vmatpush.msra.mxu0 0.0
      %568 = vmatpush.msra.mxu0 0.0
      %569 = vmatpush.msra.mxu0 0.0
      %570 = vmatpush.msra.mxu0 0.0
      %571 = vmatpush.msra.mxu0 0.0
      %572 = vmatpush.msra.mxu0 0.0
      %573 = vmatpush.msra.mxu0 0.0
      %574 = vmatpush.msra.mxu0 0.0
      %575 = vmatpush.msra.mxu0 0.0
      %576 = vmatpush.msra.mxu0 0.0
      %577 = vmatpush.msra.mxu0 0.0
      %578 = vmatpush.msra.mxu0 0.0
      %579 = vmatpush.msra.mxu0 0.0
      %580 = vmatpush.msra.mxu0 0.0
      %581 = vmatpush.msra.mxu0 %v556
      %582 = vmatmul.f32.gmra.mxu0 %v561
      %v583 = vpop.f32.mrf.mxu0
      %v584 = vadd.f32 0.0, %v583
      %585 = vmatmul.f32.gmra.mxu0 %v564
      %v586 = vpop.f32.mrf.mxu0
      %v587 = vadd.f32 0.0, %v586
      %588 = vdwg.mxu0
      %v589 = vadd.f32 %v507, %v584
      %v590 = vadd.f32 %v512, %v587
      %s591 = scalar_lea.vmem %s3, 16
      %v592 = vld [vmem:[%s591] sm:$0xff]
      %v593 = vld [vmem:[%s591 + $0x8] sm:$0xff]
      %v595 = vsel %vm559, %v592, 0
      %v598 = vsel %vm559, %v593, 0
      %600 = vmatpush.msra.mxu0 0.0
      %601 = vmatpush.msra.mxu0 0.0
      %602 = vmatpush.msra.mxu0 0.0
      %603 = vmatpush.msra.mxu0 0.0
      %604 = vmatpush.msra.mxu0 0.0
      %605 = vmatpush.msra.mxu0 0.0
      %606 = vmatpush.msra.mxu0 0.0
      %607 = vmatpush.msra.mxu0 0.0
      %608 = vmatpush.msra.mxu0 0.0
      %609 = vmatpush.msra.mxu0 0.0
      %610 = vmatpush.msra.mxu0 0.0
      %611 = vmatpush.msra.mxu0 0.0
      %612 = vmatpush.msra.mxu0 0.0
      %613 = vmatpush.msra.mxu0 0.0
      %614 = vmatpush.msra.mxu0 0.0
      %615 = vmatpush.msra.mxu0 %v543
      %616 = vmatmul.f32.gmra.mxu0 %v595
      %v617 = vpop.f32.mrf.mxu0
      %v618 = vadd.f32 0.0, %v617
      %619 = vmatmul.f32.gmra.mxu0 %v598
      %v620 = vpop.f32.mrf.mxu0
      %v621 = vadd.f32 0.0, %v620
      %622 = vdwg.mxu0
      %v623 = vadd.f32 %v589, %v618
      %v624 = vadd.f32 %v590, %v621
      %vm625 = vcmp.lt.s32.totalorder %v225, 7
      %v626 = vsel %vm625, 1, 0
      %vm627 = vcmp.eq.s32.totalorder %v626, 1
      %628 = vrot.lane.b32.xlu0 %v551, 127
      %v629 = vpop.permute.xlu0 %628
      %v631 = vsel %vm627, %v629, 0.0
      %s632 = scalar_lea.vmem %s3, 32
      %v633 = vld [vmem:[%s632] sm:$0xff]
      %v634 = vld [vmem:[%s632 + $0x8] sm:$0xff]
      %v636 = vsel %vm559, %v633, 0
      %v639 = vsel %vm559, %v634, 0
      %641 = vmatpush.msra.mxu0 0.0
      %642 = vmatpush.msra.mxu0 0.0
      %643 = vmatpush.msra.mxu0 0.0
      %644 = vmatpush.msra.mxu0 0.0
      %645 = vmatpush.msra.mxu0 0.0
      %646 = vmatpush.msra.mxu0 0.0
      %647 = vmatpush.msra.mxu0 0.0
      %648 = vmatpush.msra.mxu0 0.0
      %649 = vmatpush.msra.mxu0 0.0
      %650 = vmatpush.msra.mxu0 0.0
      %651 = vmatpush.msra.mxu0 0.0
      %652 = vmatpush.msra.mxu0 0.0
      %653 = vmatpush.msra.mxu0 0.0
      %654 = vmatpush.msra.mxu0 0.0
      %655 = vmatpush.msra.mxu0 0.0
      %656 = vmatpush.msra.mxu0 %v631
      %657 = vmatmul.f32.gmra.mxu0 %v636
      %v658 = vpop.f32.mrf.mxu0
      %v659 = vadd.f32 0.0, %v658
      %660 = vmatmul.f32.gmra.mxu0 %v639
      %v661 = vpop.f32.mrf.mxu0
      %v662 = vadd.f32 0.0, %v661
      %663 = vdwg.mxu0
      %v664 = vadd.f32 %v623, %v659
      %v665 = vadd.f32 %v624, %v662
      %v666 = vmax.f32 %v664, 0.0
      %v667 = vmax.f32 %v665, 0.0
      %670 = vrot.lane.b32.xlu0 %v666, 126
      %v671 = vpop.permute.xlu0 %670
      %672 = vrot.lane.b32.xlu0 %v667, 126
      %v673 = vpop.permute.xlu0 %672
      %676 = vrot.lane.b32.xlu0 %v666, 124
      %v677 = vpop.permute.xlu0 %676
      %678 = vrot.lane.b32.xlu0 %v667, 124
      %v679 = vpop.permute.xlu0 %678
      %682 = vrot.lane.b32.xlu0 %v666, 122
      %v683 = vpop.permute.xlu0 %682
      %684 = vrot.lane.b32.xlu0 %v667, 122
      %v685 = vpop.permute.xlu0 %684
      %v688 = vrot.slane %v677, 4
      %v689 = vsel %vm365, %v688, %v666
      %v690 = vrot.slane %v666, 4
      %v691 = vsel %vm365, %v677, %v690
      %v693 = vunpack.c.l.s4 1983009808
      %v694 = vunpack.c.0.s8 %v693
      %v695 = vperm.slane %v689, %v694
      %v697 = vunpack.c.l.s4 1983009808
      %v698 = vunpack.c.0.s8 %v697
      %v699 = vperm.slane %v691, %v698
      %v700 = vrot.slane %v683, 4
      %v701 = vsel %vm365, %v700, %v671
      %v702 = vrot.slane %v671, 4
      %v703 = vsel %vm365, %v683, %v702
      %v705 = vunpack.c.l.s4 1983009808
      %v706 = vunpack.c.0.s8 %v705
      %v707 = vperm.slane %v701, %v706
      %v709 = vunpack.c.l.s4 1983009808
      %v710 = vunpack.c.0.s8 %v709
      %v711 = vperm.slane %v703, %v710
      %v712 = vrot.slane %v707, 4
      %v713 = vsel %vm365, %v712, %v695
      %v714 = vrot.slane %v695, 4
      %v715 = vsel %vm365, %v707, %v714
      %v717 = vunpack.c.l.s4 1934713408
      %v718 = vunpack.c.0.s8 %v717
      %v719 = vperm.slane %v713, %v718
      %v721 = vunpack.c.l.s4 1934713408
      %v722 = vunpack.c.0.s8 %v721
      %v723 = vperm.slane %v715, %v722
      %v724 = vrot.slane %v711, 4
      %v725 = vsel %vm365, %v724, %v699
      %v726 = vrot.slane %v699, 4
      %v727 = vsel %vm365, %v711, %v726
      %v729 = vunpack.c.l.s4 1934713408
      %v730 = vunpack.c.0.s8 %v729
      %v731 = vperm.slane %v725, %v730
      %v733 = vunpack.c.l.s4 1934713408
      %v734 = vunpack.c.0.s8 %v733
      %v735 = vperm.slane %v727, %v734
      %v736 = vrot.slane %v719, 4
      %v737 = vsel %vm365, 0.0, %v736
      %v738 = vrot.slane %v723, 4
      %v739 = vsel %vm365, 0.0, %v738
      %v740 = vrot.slane %v731, 4
      %v741 = vsel %vm365, 0.0, %v740
      %v742 = vrot.slane %v735, 4
      %v743 = vsel %vm365, 0.0, %v742
      %v744 = vrot.slane %v679, 4
      %v745 = vsel %vm365, %v744, %v667
      %v746 = vrot.slane %v667, 4
      %v747 = vsel %vm365, %v679, %v746
      %v749 = vunpack.c.l.s4 1983009808
      %v750 = vunpack.c.0.s8 %v749
      %v751 = vperm.slane %v745, %v750
      %v753 = vunpack.c.l.s4 1983009808
      %v754 = vunpack.c.0.s8 %v753
      %v755 = vperm.slane %v747, %v754
      %v756 = vrot.slane %v685, 4
      %v757 = vsel %vm365, %v756, %v673
      %v758 = vrot.slane %v673, 4
      %v759 = vsel %vm365, %v685, %v758
      %v761 = vunpack.c.l.s4 1983009808
      %v762 = vunpack.c.0.s8 %v761
      %v763 = vperm.slane %v757, %v762
      %v765 = vunpack.c.l.s4 1983009808
      %v766 = vunpack.c.0.s8 %v765
      %v767 = vperm.slane %v759, %v766
      %v768 = vrot.slane %v763, 4
      %v769 = vsel %vm365, %v768, %v751
      %v770 = vrot.slane %v751, 4
      %v771 = vsel %vm365, %v763, %v770
      %v773 = vunpack.c.l.s4 1934713408
      %v774 = vunpack.c.0.s8 %v773
      %v775 = vperm.slane %v769, %v774
      %v777 = vunpack.c.l.s4 1934713408
      %v778 = vunpack.c.0.s8 %v777
      %v779 = vperm.slane %v771, %v778
      %v780 = vrot.slane %v767, 4
      %v781 = vsel %vm365, %v780, %v755
      %v782 = vrot.slane %v755, 4
      %v783 = vsel %vm365, %v767, %v782
      %v785 = vunpack.c.l.s4 1934713408
      %v786 = vunpack.c.0.s8 %v785
      %v787 = vperm.slane %v781, %v786
      %v789 = vunpack.c.l.s4 1934713408
      %v790 = vunpack.c.0.s8 %v789
      %v791 = vperm.slane %v783, %v790
      %v792 = vrot.slane %v775, 4
      %v793 = vsel %vm365, 0.0, %v792
      %v794 = vrot.slane %v779, 4
      %v795 = vsel %vm365, 0.0, %v794
      %v796 = vrot.slane %v787, 4
      %v797 = vsel %vm365, 0.0, %v796
      %v798 = vrot.slane %v791, 4
      %v799 = vsel %vm365, 0.0, %v798
      %vm800 = vcmask 11264
      %v801 = vsel %vm800, %v719, 0.0
      %802 = vadd.xlane.f32.xlu0 %v801
      %v803 = vpop.xlane.xlu0 %802
      %v804 = vsel %vm800, %v737, 0.0
      %805 = vadd.xlane.f32.xlu0 %v804
      %v806 = vpop.xlane.xlu0 %805
      %v807 = vsel %vm800, %v723, 0.0
      %808 = vadd.xlane.f32.xlu0 %v807
      %v809 = vpop.xlane.xlu0 %808
      %v810 = vsel %vm800, %v739, 0.0
      %811 = vadd.xlane.f32.xlu0 %v810
      %v812 = vpop.xlane.xlu0 %811
      %v813 = vsel %vm800, %v731, 0.0
      %814 = vadd.xlane.f32.xlu0 %v813
      %v815 = vpop.xlane.xlu0 %814
      %v816 = vsel %vm800, %v741, 0.0
      %817 = vadd.xlane.f32.xlu0 %v816
      %v818 = vpop.xlane.xlu0 %817
      %v819 = vsel %vm800, %v735, 0.0
      %820 = vadd.xlane.f32.xlu0 %v819
      %v821 = vpop.xlane.xlu0 %820
      %v822 = vsel %vm800, %v743, 0.0
      %823 = vadd.xlane.f32.xlu0 %v822
      %v824 = vpop.xlane.xlu0 %823
      %v825 = vsel %vm800, %v775, 0.0
      %826 = vadd.xlane.f32.xlu0 %v825
      %v827 = vpop.xlane.xlu0 %826
      %v828 = vsel %vm800, %v793, 0.0
      %829 = vadd.xlane.f32.xlu0 %v828
      %v830 = vpop.xlane.xlu0 %829
      %v831 = vsel %vm800, %v779, 0.0
      %832 = vadd.xlane.f32.xlu0 %v831
      %v833 = vpop.xlane.xlu0 %832
      %v834 = vsel %vm800, %v795, 0.0
      %835 = vadd.xlane.f32.xlu0 %v834
      %v836 = vpop.xlane.xlu0 %835
      %v837 = vsel %vm800, %v787, 0.0
      %838 = vadd.xlane.f32.xlu0 %v837
      %v839 = vpop.xlane.xlu0 %838
      %v840 = vsel %vm800, %v797, 0.0
      %841 = vadd.xlane.f32.xlu0 %v840
      %v842 = vpop.xlane.xlu0 %841
      %v843 = vsel %vm800, %v791, 0.0
      %844 = vadd.xlane.f32.xlu0 %v843
      %v845 = vpop.xlane.xlu0 %844
      %v846 = vsel %vm800, %v799, 0.0
      %847 = vadd.xlane.f32.xlu0 %v846
      %v848 = vpop.xlane.xlu0 %847
      %v849 = vmul.f32 %v803, 0.5
      %v850 = vmul.f32 %v806, 0.5
      %v851 = vmul.f32 %v809, 0.5
      %v852 = vmul.f32 %v812, 0.5
      %v853 = vmul.f32 %v815, 0.5
      %v854 = vmul.f32 %v818, 0.5
      %v855 = vmul.f32 %v821, 0.5
      %v856 = vmul.f32 %v824, 0.5
      %v857 = vmul.f32 %v827, 0.5
      %v858 = vmul.f32 %v830, 0.5
      %v859 = vmul.f32 %v833, 0.5
      %v860 = vmul.f32 %v836, 0.5
      %v861 = vmul.f32 %v839, 0.5
      %v862 = vmul.f32 %v842, 0.5
      %v863 = vmul.f32 %v845, 0.5
      %v864 = vmul.f32 %v848, 0.5
      %v881 = vperm.slane %v849, %v225
      %v882 = vperm.slane %v850, %v225
      %v883 = vperm.slane %v851, %v225
      %v884 = vperm.slane %v852, %v225
      %v885 = vperm.slane %v853, %v225
      %v886 = vperm.slane %v854, %v225
      %v887 = vperm.slane %v855, %v225
      %v888 = vperm.slane %v856, %v225
      %v889 = vperm.slane %v857, %v225
      %v890 = vperm.slane %v858, %v225
      %v891 = vperm.slane %v859, %v225
      %v892 = vperm.slane %v860, %v225
      %v893 = vperm.slane %v861, %v225
      %v894 = vperm.slane %v862, %v225
      %v895 = vperm.slane %v863, %v225
      %v896 = vperm.slane %v864, %v225
      %v897 = vsel %vm530, %v882, %v881
      %v898 = vsel %vm532, %v883, %v897
      %v899 = vsel %vm534, %v884, %v898
      %v900 = vsel %vm536, %v885, %v899
      %v901 = vsel %vm538, %v886, %v900
      %v902 = vsel %vm540, %v887, %v901
      %v903 = vsel %vm542, %v888, %v902
      %v904 = vsel %vm530, %v890, %v889
      %v905 = vsel %vm532, %v891, %v904
      %v906 = vsel %vm534, %v892, %v905
      %v907 = vsel %vm536, %v893, %v906
      %v908 = vsel %vm538, %v894, %v907
      %v909 = vsel %vm540, %v895, %v908
      %v910 = vsel %vm542, %v896, %v909
      %913 = vst.msk [vmem:[%s221] sm:$0xff] %vm247, %v903
      %914 = vst.msk [vmem:[%s221 + $0x8] sm:$0xff] %vm247, %v910
      %p915 = scmp.lt.s32.totalorder %s16, 1
      %s916 = scalar_select %p915, %s16, 1
      %s917 = smul.addr %s916, 2
      %s918 = smul.addr %s917, 8
      %s919 = scalar_lea.vmem %s5, %s918
      // Predicated region
      $region41: #{simple_cnn_forward.1} parent=39 // pred_check
        %p920 = pneg %p144
      $region42: #{simple_cnn_forward.1} parent=39 // pred_check_branch
        %922 = sbr.rel (%p920) target = $region44
      $region43: #{simple_cnn_forward.1} parent=39 // pred_region
        _
      $region44: #{simple_cnn_forward.1} parent=39 // pred_fallthru
        _
    $region40: #{simple_cnn_forward.1} parent=5 // pred_fallthru
      _
    %p923 = scmp.le.s32.totalorder 2, %s11
    // Predicated region
    $region45: #{simple_cnn_forward.1} parent=5 // pred_check
      %p924 = pneg %p923
    $region46: #{simple_cnn_forward.1} parent=5 // pred_check_branch
      %926 = sbr.rel (%p924) target = $region48
    $region47: #{simple_cnn_forward.1} parent=5 // pred_region
      %s927 = ssub.s32 %s11, 2
      // Predicated region
      $region49: #{simple_cnn_forward.1} parent=47 // pred_check
        %p928 = pneg %p150
      $region50: #{simple_cnn_forward.1} parent=47 // pred_check_branch
        %930 = sbr.rel (%p928) target = $region52
      $region51: #{simple_cnn_forward.1} parent=47 // pred_region
        %p931 = scmp.lt.s32.totalorder %s17, 1
        %s932 = scalar_select %p931, %s17, 1
        %s933 = smul.addr %s932, 2
        %s934 = smul.addr %s933, 8
        %s935 = scalar_lea.vmem %s5, %s934
      $region52: #{simple_cnn_forward.1} parent=47 // pred_fallthru
        _
    $region48: #{simple_cnn_forward.1} parent=5 // pred_fallthru
      _
  $region6: #{simple_cnn_forward.1} parent=0 // loop_footer
    %s15 = sadd.s32 1, %s11
  $region7: #{simple_cnn_forward.1} parent=0 // loop_footer_branch
    %10 = sbr.rel target = $region3
  $region8: #{simple_cnn_forward.1} parent=0 // loop_exit
    _

</llo_original>
